<compile_context>
chip_gen: v7x
topology: tpu7x:2x2x1
jax: 0.10.0
libtpu: 0.0.40
codegen_flags: <defaults>
</compile_context>

<pallas_src>
import jax
import jax.numpy as jnp
from jax.experimental import pallas as pl
from jax.experimental.pallas import tpu as pltpu


def _round_up(x, m):
    return (x + m - 1) // m * m


# ----------------------------- fused kernel --------------------------------

def _make_adv_mlp_kernel(num_layers: int, out_class: int):
    """Kernel for one batch tile: MLP -> CE(date) -> weighted loss accumulation."""

    def kernel(*refs):
        # refs = [x, (w,b)*num_layers, date, sample_weight, pred_out, loss_out]
        x_ref = refs[0]
        wb_refs = refs[1:1 + 2 * num_layers]
        date_ref = refs[1 + 2 * num_layers]          # (TB, 1) int32
        wgt_ref = refs[2 + 2 * num_layers]           # (TB, 1) f32 (all scaling pre-folded)
        pred_ref, loss_ref = refs[-2], refs[-1]

        # ---- MLP: Linear -> ReLU (Dropout p=0 == identity), final Linear no ReLU ----
        # bf16 MXU inputs, f32 accumulation.
        h = x_ref[...]                                               # (TB, Fp) f32
        for i in range(num_layers):
            w = wb_refs[2 * i][...]                                  # (Cin_p, Cout_p) bf16
            b = wb_refs[2 * i + 1][...]                              # (1, Cout_p) f32
            h = jnp.dot(h.astype(jnp.bfloat16), w,
                        preferred_element_type=jnp.float32) + b
            if i < num_layers - 1:
                h = jnp.maximum(h, 0.0)                              # ReLU
        logits = h                                                   # (TB, Cp) f32
        pred_ref[...] = logits.astype(pred_ref.dtype)                # lane-dense store

        TB, Cp = logits.shape
        col = jax.lax.broadcasted_iota(jnp.int32, (TB, Cp), 1)
        masked = jnp.where(col < out_class, logits, -1e30)           # kill padded classes

        # ---- CrossEntropyLoss(reduction='none') with target = date ----
        m = jnp.max(masked, axis=-1, keepdims=True)                  # (TB, 1)
        lse = jnp.log(jnp.sum(jnp.exp(masked - m), axis=-1, keepdims=True)) + m
        date_oh = (col == date_ref[...]).astype(jnp.float32)         # (TB, Cp) one-hot
        picked = jnp.sum(date_oh * masked, axis=-1, keepdims=True)
        ce = lse - picked                                            # (TB, 1) per-sample CE

        # ---- accumulate sum(ce * weight); weight already includes
        #      total_size/L/label_distribution[date,y] * loss_coeff/(hook_coeff+1)/B ----
        @pl.when(pl.program_id(0) == 0)
        def _():
            loss_ref[...] = jnp.zeros_like(loss_ref)

        loss_ref[...] += jnp.sum(ce * wgt_ref[...], axis=0, keepdims=True)

    return kernel


# ----------------------------- wrapper --------------------------------------

def adv_mlp_forward(feature, y, date, hook_coeff, loss_coeff, params,
                    label_distribution, class_conditional=True):
    """Fused AdvMLPClassifier.forward. Returns (prediction (B, out_class), loss scalar)."""
    B = feature.shape[0]
    x = feature.reshape(B, -1).astype(jnp.float32)                   # feature.view(len(feature), -1)
    # TODO(synk): grl_hook gradient reversal is backward-only; no forward-pass equivalent.

    F = x.shape[1]
    layers = params["layers"]                                        # [(W (Cin,Cout), b (1,Cout)), ...]
    num_layers = len(layers)
    C = layers[-1][0].shape[1]

    LANE = 128
    Fp = _round_up(F, LANE)
    Cp = _round_up(C, LANE)
    TB = 128 if B >= 128 else _round_up(max(B, 8), 8)                # batch tile (sublane-aligned)
    Bp = _round_up(B, TB)
    nsteps = Bp // TB

    # ---- pad x / weights to lane-dense shapes (zeros -> result unchanged) ----
    x_p = jnp.zeros((Bp, Fp), jnp.float32).at[:B, :F].set(x)

    flat_wb = []
    padded_in = Fp
    for i, (w, b) in enumerate(layers):
        cin, cout = w.shape
        cout_p = _round_up(cout, LANE)
        w_p = jnp.zeros((padded_in, cout_p), jnp.float32).at[:cin, :cout].set(w)
        b_p = jnp.zeros((1, cout_p), jnp.float32).at[:, :cout].set(b.reshape(1, -1))
        flat_wb += [w_p.astype(jnp.bfloat16), b_p]                   # bf16 weights halve VMEM
        padded_in = cout_p

    # ---- per-sample adversarial weight (plain XLA gather; constants folded in) ----
    date_i = date.astype(jnp.int32)
    y_i = y.astype(jnp.int32)
    ldist = label_distribution.astype(jnp.float32)
    total_size = jnp.sum(ldist)
    L = ldist.shape[1]
    if class_conditional:
        w_s = total_size / jnp.float32(L) / ldist[date_i, y_i]       # label_distribution[date, y]
    else:
        w_s = total_size / jnp.sum(ldist, axis=1)[date_i]            # domain_distribution[date]
    scale = (jnp.asarray(loss_coeff, jnp.float32)
             / (jnp.asarray(hook_coeff, jnp.float32) + 1.0) / jnp.float32(B))
    w_s = (w_s * scale).astype(jnp.float32)                          # (B,)
    wgt_p = jnp.zeros((Bp, 1), jnp.float32).at[:B, 0].set(w_s)       # padded rows -> 0 contribution
    date_p = jnp.zeros((Bp, 1), jnp.int32).at[:B, 0].set(date_i)

    # ---- BlockSpecs: x/date/wgt/pred tiled on batch, weights resident, loss accumulator ----
    batch_map = lambda i: (i, 0)
    const_map = lambda i: (0, 0)
    in_specs = [pl.BlockSpec((TB, Fp), batch_map)]
    for i in range(num_layers):
        in_specs.append(pl.BlockSpec(flat_wb[2 * i].shape, const_map))
        in_specs.append(pl.BlockSpec(flat_wb[2 * i + 1].shape, const_map))
    in_specs += [pl.BlockSpec((TB, 1), batch_map),                   # date
                 pl.BlockSpec((TB, 1), batch_map)]                   # per-sample weight
    out_specs = (pl.BlockSpec((TB, Cp), batch_map),                  # padded prediction
                 pl.BlockSpec((1, 1), const_map))                    # resident loss accumulator

    pred_p, loss = pl.pallas_call(
        _make_adv_mlp_kernel(num_layers, C),
        out_shape=(jax.ShapeDtypeStruct((Bp, Cp), jnp.float32),
                   jax.ShapeDtypeStruct((1, 1), jnp.float32)),
        grid=(nsteps,),
        in_specs=in_specs,
        out_specs=out_specs,
        compiler_params=pltpu.CompilerParams(
            dimension_semantics=("arbitrary",),                      # loss accumulator forces it
            vmem_limit_bytes=48 * 1024 * 1024),                      # fits v7x (64 MiB) and v5e/v6e
    )(x_p, *flat_wb, date_p, wgt_p)

    return pred_p[:B, :C], loss[0, 0]


# ----------------------------- parameters -----------------------------------

def init_params(key, in_feat_size, hidden_units_size, out_class):
    """MLP(in_feat_size, hidden_units_size + [out_class]) parameter shapes, (Cin, Cout) layout."""
    dims = [in_feat_size] + list(hidden_units_size) + [out_class]
    layers = []
    for i in range(len(dims) - 1):
        key, kw, kb = jax.random.split(key, 3)
        w = jax.random.normal(kw, (dims[i], dims[i + 1]), jnp.float32) * (2.0 / dims[i]) ** 0.5
        b = jax.random.normal(kb, (1, dims[i + 1]), jnp.float32) * 0.01
        layers.append((w, b))
    return {"layers": layers}


# ----------------------------- pure-JAX reference ----------------------------

def reference_forward(feature, y, date, hook_coeff, loss_coeff, params,
                      label_distribution, class_conditional=True):
    B = feature.shape[0]
    h = feature.reshape(B, -1).astype(jnp.float32)
    layers = params["layers"]
    for i, (w, b) in enumerate(layers):
        h = h @ w + b
        if i < len(layers) - 1:
            h = jnp.maximum(h, 0.0)
    logits = h
    lse = jax.scipy.special.logsumexp(logits, axis=-1)
    ce = lse - logits[jnp.arange(B), date]
    total = jnp.sum(label_distribution)
    L = label_distribution.shape[1]
    if class_conditional:
        weight = total / L / label_distribution[date, y]
    else:
        weight = total / jnp.sum(label_distribution, axis=1)[date]
    loss = jnp.mean(ce * weight) * loss_coeff / (hook_coeff + 1.0)
    return logits, loss


# ----------------------------- main ------------------------------------------

if __name__ == "__main__":
    key = jax.random.PRNGKey(0)
    kx, ky, kd, kl, kp = jax.random.split(key, 5)

    B = 8                       # batch
    FEAT_SHAPE = (B, 4, 8)      # feature before .view(len(feature), -1) -> in_feat_size = 32
    IN_FEAT = 4 * 8
    HIDDEN = [64, 32]           # hidden_units_size
    OUT_CLASS = 4               # number of date/domain categories (classifier output)
    NUM_CLASSES = 6             # L

    feature = jax.random.normal(kx, FEAT_SHAPE, jnp.float32)
    y = jax.random.randint(ky, (B,), 0, NUM_CLASSES, jnp.int32)        # class labels
    date = jax.random.randint(kd, (B,), 0, OUT_CLASS, jnp.int32)       # date/domain targets
    label_distribution = jax.random.randint(kl, (OUT_CLASS, NUM_CLASSES), 1, 9).astype(jnp.float32)
    hook_coeff = 0.5
    loss_coeff = 2.0

    params = init_params(kp, IN_FEAT, HIDDEN, OUT_CLASS)

    fwd = jax.jit(adv_mlp_forward, static_argnames=("class_conditional",))
    pred, loss = fwd(feature, y, date, hook_coeff, loss_coeff, params, label_distribution)
    pred = jax.block_until_ready(pred)
    loss = jax.block_until_ready(loss)

    # correctness check against pure-JAX f32 reference (kernel uses bf16 MXU inputs, f32 accum)
    ref_pred, ref_loss = reference_forward(feature, y, date, hook_coeff, loss_coeff,
                                           params, label_distribution)
    assert pred.shape == (B, OUT_CLASS), pred.shape
    assert jnp.all(jnp.isfinite(pred)) and jnp.isfinite(loss)
    assert jnp.allclose(pred, ref_pred, rtol=2e-2, atol=2e-2)
    assert jnp.allclose(loss, ref_loss, rtol=2e-2, atol=2e-2)

    print("KERNEL_OK")
</pallas_src>

<mosaic_0001>
module attributes {stable_mosaic.version = 11 : i64} {
  func.func @kernel(%arg0: i32, %arg1: memref<8x128xf32, #tpu.memory_space<vmem>>, %arg2: memref<128x128xbf16, #tpu.memory_space<vmem>>, %arg3: memref<1x128xf32, #tpu.memory_space<vmem>>, %arg4: memref<128x128xbf16, #tpu.memory_space<vmem>>, %arg5: memref<1x128xf32, #tpu.memory_space<vmem>>, %arg6: memref<128x128xbf16, #tpu.memory_space<vmem>>, %arg7: memref<1x128xf32, #tpu.memory_space<vmem>>, %arg8: memref<8x1xi32, #tpu.memory_space<vmem>>, %arg9: memref<8x1xf32, #tpu.memory_space<vmem>>, %arg10: memref<8x128xf32, #tpu.memory_space<vmem>>, %arg11: memref<1x1xf32, #tpu.memory_space<vmem>>) attributes {dimension_semantics = [#tpu.dimension_semantics<arbitrary>], iteration_bounds = array<i64: 1>, scalar_prefetch = 0 : i64, scratch_operands = 0 : i64, tpu.core_type = #tpu.core_type<tc>, window_params = [{transform_indices = @transform_0, window_bounds = array<i64: 8, 128>}, {pipeline_mode = #tpu.pipeline_mode<synchronous>, transform_indices = @transform_1, window_bounds = array<i64: 128, 128>}, {pipeline_mode = #tpu.pipeline_mode<synchronous>, transform_indices = @transform_2, window_bounds = array<i64: 1, 128>}, {pipeline_mode = #tpu.pipeline_mode<synchronous>, transform_indices = @transform_3, window_bounds = array<i64: 128, 128>}, {pipeline_mode = #tpu.pipeline_mode<synchronous>, transform_indices = @transform_4, window_bounds = array<i64: 1, 128>}, {pipeline_mode = #tpu.pipeline_mode<synchronous>, transform_indices = @transform_5, window_bounds = array<i64: 128, 128>}, {pipeline_mode = #tpu.pipeline_mode<synchronous>, transform_indices = @transform_6, window_bounds = array<i64: 1, 128>}, {transform_indices = @transform_7, window_bounds = array<i64: 8, 1>}, {transform_indices = @transform_8, window_bounds = array<i64: 8, 1>}, {transform_indices = @transform_9, window_bounds = array<i64: 8, 128>}, {pipeline_mode = #tpu.pipeline_mode<synchronous>, transform_indices = @transform_10, window_bounds = array<i64: 1, 1>}]} {
    %c0 = arith.constant 0 : index
    %c0_0 = arith.constant 0 : index
    %0 = vector.load %arg1[%c0, %c0_0] : memref<8x128xf32, #tpu.memory_space<vmem>>, vector<8x128xf32>
    %c0_1 = arith.constant 0 : index
    %c0_2 = arith.constant 0 : index
    %1 = vector.load %arg2[%c0_1, %c0_2] : memref<128x128xbf16, #tpu.memory_space<vmem>>, vector<128x128xbf16>
    %c0_3 = arith.constant 0 : index
    %c0_4 = arith.constant 0 : index
    %2 = vector.load %arg3[%c0_3, %c0_4] : memref<1x128xf32, #tpu.memory_space<vmem>>, vector<1x128xf32>
    %3 = arith.truncf %0 : vector<8x128xf32> to vector<8x128xbf16>
    %cst = arith.constant dense<0.000000e+00> : vector<8x128xf32>
    %4 = tpu.matmul %3, %1, %cst {dimension_numbers = #tpu.dot_dimension_numbers<[1], [0], [0], [1], [0, 0, 1, 1], [], []>} : vector<8x128xbf16>, vector<128x128xbf16>, vector<8x128xf32> -> vector<8x128xf32>
    %5 = vector.broadcast %2 : vector<1x128xf32> to vector<8x128xf32>
    %6 = arith.addf %4, %5 : vector<8x128xf32>
    %cst_5 = arith.constant 0.000000e+00 : f32
    %7 = vector.broadcast %cst_5 : f32 to vector<8x128xf32>
    %8 = arith.maximumf %6, %7 : vector<8x128xf32>
    %c0_6 = arith.constant 0 : index
    %c0_7 = arith.constant 0 : index
    %9 = vector.load %arg4[%c0_6, %c0_7] : memref<128x128xbf16, #tpu.memory_space<vmem>>, vector<128x128xbf16>
    %c0_8 = arith.constant 0 : index
    %c0_9 = arith.constant 0 : index
    %10 = vector.load %arg5[%c0_8, %c0_9] : memref<1x128xf32, #tpu.memory_space<vmem>>, vector<1x128xf32>
    %11 = arith.truncf %8 : vector<8x128xf32> to vector<8x128xbf16>
    %cst_10 = arith.constant dense<0.000000e+00> : vector<8x128xf32>
    %12 = tpu.matmul %11, %9, %cst_10 {dimension_numbers = #tpu.dot_dimension_numbers<[1], [0], [0], [1], [0, 0, 1, 1], [], []>} : vector<8x128xbf16>, vector<128x128xbf16>, vector<8x128xf32> -> vector<8x128xf32>
    %13 = vector.broadcast %10 : vector<1x128xf32> to vector<8x128xf32>
    %14 = arith.addf %12, %13 : vector<8x128xf32>
    %cst_11 = arith.constant 0.000000e+00 : f32
    %15 = vector.broadcast %cst_11 : f32 to vector<8x128xf32>
    %16 = arith.maximumf %14, %15 : vector<8x128xf32>
    %c0_12 = arith.constant 0 : index
    %c0_13 = arith.constant 0 : index
    %17 = vector.load %arg6[%c0_12, %c0_13] : memref<128x128xbf16, #tpu.memory_space<vmem>>, vector<128x128xbf16>
    %c0_14 = arith.constant 0 : index
    %c0_15 = arith.constant 0 : index
    %18 = vector.load %arg7[%c0_14, %c0_15] : memref<1x128xf32, #tpu.memory_space<vmem>>, vector<1x128xf32>
    %19 = arith.truncf %16 : vector<8x128xf32> to vector<8x128xbf16>
    %cst_16 = arith.constant dense<0.000000e+00> : vector<8x128xf32>
    %20 = tpu.matmul %19, %17, %cst_16 {dimension_numbers = #tpu.dot_dimension_numbers<[1], [0], [0], [1], [0, 0, 1, 1], [], []>} : vector<8x128xbf16>, vector<128x128xbf16>, vector<8x128xf32> -> vector<8x128xf32>
    %21 = vector.broadcast %18 : vector<1x128xf32> to vector<8x128xf32>
    %22 = arith.addf %20, %21 : vector<8x128xf32>
    %c0_17 = arith.constant 0 : index
    %c0_18 = arith.constant 0 : index
    %23 = vector.load %arg10[%c0_17, %c0_18] : memref<8x128xf32, #tpu.memory_space<vmem>>, vector<8x128xf32>
    tpu.vector_store %arg10[%c0_17, %c0_18], %22 {strides = array<i32>} : memref<8x128xf32, #tpu.memory_space<vmem>>, vector<8x128xf32>,
    %24 = tpu.iota {dimensions = array<i32: 1>} : vector<8x128xi32>
    %c4_i32 = arith.constant 4 : i32
    %25 = vector.broadcast %c4_i32 : i32 to vector<8x128xi32>
    %26 = arith.cmpi slt, %24, %25 : vector<8x128xi32>
    %cst_19 = arith.constant -1.000000e+30 : f32
    %27 = vector.broadcast %cst_19 : f32 to vector<8x128xf32>
    %28 = arith.select %26, %22, %27 : vector<8x128xi1>, vector<8x128xf32>
    %cst_20 = arith.constant dense<0xFF800000> : vector<8xf32>
    %29 = vector.multi_reduction <maximumf>, %28, %cst_20 [1] : vector<8x128xf32> to vector<8xf32>
    %30 = vector.shape_cast %29 : vector<8xf32> to vector<8x1xf32>
    %31 = vector.broadcast %30 : vector<8x1xf32> to vector<8x128xf32>
    %32 = arith.subf %28, %31 : vector<8x128xf32>
    %33 = math.exp %32 : vector<8x128xf32>
    %cst_21 = arith.constant dense<0.000000e+00> : vector<8xf32>
    %34 = vector.multi_reduction <add>, %33, %cst_21 [1] : vector<8x128xf32> to vector<8xf32>
    %35 = vector.shape_cast %34 : vector<8xf32> to vector<8x1xf32>
    %36 = math.log %35 : vector<8x1xf32>
    %37 = arith.addf %36, %30 : vector<8x1xf32>
    %c0_22 = arith.constant 0 : index
    %c0_23 = arith.constant 0 : index
    %38 = vector.load %arg8[%c0_22, %c0_23] : memref<8x1xi32, #tpu.memory_space<vmem>>, vector<8x1xi32>
    %39 = vector.broadcast %38 : vector<8x1xi32> to vector<8x128xi32>
    %40 = arith.cmpi eq, %24, %39 : vector<8x128xi32>
    %41 = arith.extui %40 : vector<8x128xi1> to vector<8x128xi32>
    %42 = arith.sitofp %41 : vector<8x128xi32> to vector<8x128xf32>
    %43 = arith.mulf %42, %28 : vector<8x128xf32>
    %cst_24 = arith.constant dense<0.000000e+00> : vector<8xf32>
    %44 = vector.multi_reduction <add>, %43, %cst_24 [1] : vector<8x128xf32> to vector<8xf32>
    %45 = vector.shape_cast %44 : vector<8xf32> to vector<8x1xf32>
    %46 = arith.subf %37, %45 : vector<8x1xf32>
    %c0_i32 = arith.constant 0 : i32
    %47 = arith.cmpi eq, %arg0, %c0_i32 : i32
    %48 = arith.extui %47 : i1 to i32
    %c0_i32_25 = arith.constant 0 : i32
    %49 = arith.cmpi ne, %48, %c0_i32_25 : i32
    scf.if %49 {
      %cst_33 = arith.constant 0.000000e+00 : f32
      %57 = vector.broadcast %cst_33 : f32 to vector<1x1xf32>
      %c0_34 = arith.constant 0 : index
      %c0_35 = arith.constant 0 : index
      %58 = vector.load %arg11[%c0_34, %c0_35] : memref<1x1xf32, #tpu.memory_space<vmem>>, vector<1x1xf32>
      tpu.vector_store %arg11[%c0_34, %c0_35], %57 {strides = array<i32>} : memref<1x1xf32, #tpu.memory_space<vmem>>, vector<1x1xf32>,
    } else {
    }
    %c0_26 = arith.constant 0 : index
    %c0_27 = arith.constant 0 : index
    %50 = vector.load %arg11[%c0_26, %c0_27] : memref<1x1xf32, #tpu.memory_space<vmem>>, vector<1x1xf32>
    %c0_28 = arith.constant 0 : index
    %c0_29 = arith.constant 0 : index
    %51 = vector.load %arg9[%c0_28, %c0_29] : memref<8x1xf32, #tpu.memory_space<vmem>>, vector<8x1xf32>
    %52 = arith.mulf %46, %51 : vector<8x1xf32>
    %cst_30 = arith.constant dense<0.000000e+00> : vector<1xf32>
    %53 = vector.multi_reduction <add>, %52, %cst_30 [0] : vector<8x1xf32> to vector<1xf32>
    %54 = vector.shape_cast %53 : vector<1xf32> to vector<1x1xf32>
    %55 = arith.addf %50, %54 : vector<1x1xf32>
    %c0_31 = arith.constant 0 : index
    %c0_32 = arith.constant 0 : index
    %56 = vector.load %arg11[%c0_31, %c0_32] : memref<1x1xf32, #tpu.memory_space<vmem>>, vector<1x1xf32>
    tpu.vector_store %arg11[%c0_31, %c0_32], %55 {strides = array<i32>} : memref<1x1xf32, #tpu.memory_space<vmem>>, vector<1x1xf32>,
    return
  }
  func.func @transform_0(%arg0: i32) -> (i32, i32) {
    %c0_i32 = arith.constant 0 : i32
    %c0_i32_0 = arith.constant 0 : i32
    return %arg0, %c0_i32 : i32, i32
  }
  func.func @transform_1(%arg0: i32) -> (i32, i32) {
    %c0_i32 = arith.constant 0 : i32
    %c0_i32_0 = arith.constant 0 : i32
    %c0_i32_1 = arith.constant 0 : i32
    return %c0_i32, %c0_i32_0 : i32, i32
  }
  func.func @transform_2(%arg0: i32) -> (i32, i32) {
    %c0_i32 = arith.constant 0 : i32
    %c0_i32_0 = arith.constant 0 : i32
    %c0_i32_1 = arith.constant 0 : i32
    return %c0_i32, %c0_i32_0 : i32, i32
  }
  func.func @transform_3(%arg0: i32) -> (i32, i32) {
    %c0_i32 = arith.constant 0 : i32
    %c0_i32_0 = arith.constant 0 : i32
    %c0_i32_1 = arith.constant 0 : i32
    return %c0_i32, %c0_i32_0 : i32, i32
  }
  func.func @transform_4(%arg0: i32) -> (i32, i32) {
    %c0_i32 = arith.constant 0 : i32
    %c0_i32_0 = arith.constant 0 : i32
    %c0_i32_1 = arith.constant 0 : i32
    return %c0_i32, %c0_i32_0 : i32, i32
  }
  func.func @transform_5(%arg0: i32) -> (i32, i32) {
    %c0_i32 = arith.constant 0 : i32
    %c0_i32_0 = arith.constant 0 : i32
    %c0_i32_1 = arith.constant 0 : i32
    return %c0_i32, %c0_i32_0 : i32, i32
  }
  func.func @transform_6(%arg0: i32) -> (i32, i32) {
    %c0_i32 = arith.constant 0 : i32
    %c0_i32_0 = arith.constant 0 : i32
    %c0_i32_1 = arith.constant 0 : i32
    return %c0_i32, %c0_i32_0 : i32, i32
  }
  func.func @transform_7(%arg0: i32) -> (i32, i32) {
    %c0_i32 = arith.constant 0 : i32
    %c0_i32_0 = arith.constant 0 : i32
    return %arg0, %c0_i32 : i32, i32
  }
  func.func @transform_8(%arg0: i32) -> (i32, i32) {
    %c0_i32 = arith.constant 0 : i32
    %c0_i32_0 = arith.constant 0 : i32
    return %arg0, %c0_i32 : i32, i32
  }
  func.func @transform_9(%arg0: i32) -> (i32, i32) {
    %c0_i32 = arith.constant 0 : i32
    %c0_i32_0 = arith.constant 0 : i32
    return %arg0, %c0_i32 : i32, i32
  }
  func.func @transform_10(%arg0: i32) -> (i32, i32) {
    %c0_i32 = arith.constant 0 : i32
    %c0_i32_0 = arith.constant 0 : i32
    %c0_i32_1 = arith.constant 0 : i32
    return %c0_i32, %c0_i32_0 : i32, i32
  }
}

</mosaic_0001>

<llo_original>
// kernel: adv_mlp_forward.1
$region0: #{adv_mlp_forward.1}
  #allocation0 [shape = 'u32[]', space=smem, size = 0x4, offset = 0x4, fixed_abs, tag = 'smem constant byte address 0x4 - core index']
  #allocation1 [shape = 'u32[144,128]{1,0:T(1,128)}', space=vmem, size = 0x12000, scoped, tag = 'internal scratch']
  %s0 = inlined_call_operand.vmem [shape: f32[8,128], index: 0, kind: input, shape index: {}]
  %s1 = inlined_call_operand.vmem [shape: bf16[128,128], index: 1, kind: input, shape index: {}]
  %s2 = inlined_call_operand.vmem [shape: f32[1,128], index: 2, kind: input, shape index: {}]
  %s3 = inlined_call_operand.vmem [shape: bf16[128,128], index: 3, kind: input, shape index: {}]
  %s4 = inlined_call_operand.vmem [shape: f32[1,128], index: 4, kind: input, shape index: {}]
  %s5 = inlined_call_operand.vmem [shape: bf16[128,128], index: 5, kind: input, shape index: {}]
  %s6 = inlined_call_operand.vmem [shape: f32[1,128], index: 6, kind: input, shape index: {}]
  %s7 = inlined_call_operand.vmem [shape: s32[8,1], index: 7, kind: input, shape index: {}]
  %s8 = inlined_call_operand.vmem [shape: f32[8,1], index: 8, kind: input, shape index: {}]
  %s9 = inlined_call_operand.vmem [shape: f32[8,128], index: 9, kind: output, shape index: {0}]
  %s10 = inlined_call_operand.hbm [shape: f32[1,1], index: 10, kind: output, shape index: {1}]
  %11 = xla_tuple %s9, %s10
  %s12 = sld [smem:[#allocation0]]
  $region58: #{adv_mlp_forward.1} parent=0
    _
  %s14 = ssub.s32 1, %s12
  %s15 = scalar_select 0, %s14, %s12
  $region1: #{adv_mlp_forward.1} parent=0
    #allocation2 [shape = 'u8[512]{0}', space=vmem, size = 0x400, scoped, tag = 'output window, operand 1, single buffered']
    #allocation3 [shape = 's32[1]{0}', space=sflag, size = 0x4, scoped, tag = 'scoped memory for adv_mlp_forward.1']
    %16 = vsyncpa [#allocation3], 0
    // Predicated region
    $region2: #{adv_mlp_forward.1} parent=1 // pred_check
      _
    $region3: #{adv_mlp_forward.1} parent=1 // pred_check_branch
      %18 = sbr.rel (0) target = $region5
    $region4: #{adv_mlp_forward.1} parent=1 // pred_region
      _
    $region5: #{adv_mlp_forward.1} parent=1 // pred_fallthru
      _
    // Predicated region
    $region6: #{adv_mlp_forward.1} parent=1 // pred_check
      _
    $region7: #{adv_mlp_forward.1} parent=1 // pred_check_branch
      %20 = sbr.rel (0) target = $region9
    $region8: #{adv_mlp_forward.1} parent=1 // pred_region
      _
    $region9: #{adv_mlp_forward.1} parent=1 // pred_fallthru
      _
    // Predicated region
    $region10: #{adv_mlp_forward.1} parent=1 // pred_check
      _
    $region11: #{adv_mlp_forward.1} parent=1 // pred_check_branch
      %22 = sbr.rel (0) target = $region13
    $region12: #{adv_mlp_forward.1} parent=1 // pred_region
      _
    $region13: #{adv_mlp_forward.1} parent=1 // pred_fallthru
      _
    // Predicated region
    $region14: #{adv_mlp_forward.1} parent=1 // pred_check
      _
    $region15: #{adv_mlp_forward.1} parent=1 // pred_check_branch
      %24 = sbr.rel (0) target = $region17
    $region16: #{adv_mlp_forward.1} parent=1 // pred_region
      _
    $region17: #{adv_mlp_forward.1} parent=1 // pred_fallthru
      _
    // Predicated region
    $region18: #{adv_mlp_forward.1} parent=1 // pred_check
      _
    $region19: #{adv_mlp_forward.1} parent=1 // pred_check_branch
      %26 = sbr.rel (0) target = $region21
    $region20: #{adv_mlp_forward.1} parent=1 // pred_region
      _
    $region21: #{adv_mlp_forward.1} parent=1 // pred_fallthru
      _
    // Predicated region
    $region22: #{adv_mlp_forward.1} parent=1 // pred_check
      _
    $region23: #{adv_mlp_forward.1} parent=1 // pred_check_branch
      %28 = sbr.rel (0) target = $region25
    $region24: #{adv_mlp_forward.1} parent=1 // pred_region
      _
    $region25: #{adv_mlp_forward.1} parent=1 // pred_fallthru
      _
    // Predicated region
    $region26: #{adv_mlp_forward.1} parent=1 // pred_check
      _
    $region27: #{adv_mlp_forward.1} parent=1 // pred_check_branch
      %30 = sbr.rel (0) target = $region29
    $region28: #{adv_mlp_forward.1} parent=1 // pred_region
      _
    $region29: #{adv_mlp_forward.1} parent=1 // pred_fallthru
      _
    // Predicated region
    $region30: #{adv_mlp_forward.1} parent=1 // pred_check
      _
    $region31: #{adv_mlp_forward.1} parent=1 // pred_check_branch
      %32 = sbr.rel (0) target = $region33
    $region32: #{adv_mlp_forward.1} parent=1 // pred_region
      _
    $region33: #{adv_mlp_forward.1} parent=1 // pred_fallthru
      _
    // Predicated region
    $region34: #{adv_mlp_forward.1} parent=1 // pred_check
      _
    $region35: #{adv_mlp_forward.1} parent=1 // pred_check_branch
      %34 = sbr.rel (0) target = $region37
    $region36: #{adv_mlp_forward.1} parent=1 // pred_region
      _
    $region37: #{adv_mlp_forward.1} parent=1 // pred_fallthru
      _
    %v36 = vld [vmem:[%s0] sm:$0xff]
    %v37 = vld [vmem:[%s1] sm:$0xf]
    %v38 = vld [vmem:[%s1 + $0x4] sm:$0xf]
    %v39 = vld [vmem:[%s1 + $0x8] sm:$0xf]
    %v40 = vld [vmem:[%s1 + $0xc] sm:$0xf]
    %v41 = vld [vmem:[%s1 + $0x10] sm:$0xf]
    %v42 = vld [vmem:[%s1 + $0x14] sm:$0xf]
    %v43 = vld [vmem:[%s1 + $0x18] sm:$0xf]
    %v44 = vld [vmem:[%s1 + $0x1c] sm:$0xf]
    %v45 = vld [vmem:[%s1 + $0x20] sm:$0xf]
    %v46 = vld [vmem:[%s1 + $0x24] sm:$0xf]
    %v47 = vld [vmem:[%s1 + $0x28] sm:$0xf]
    %v48 = vld [vmem:[%s1 + $0x2c] sm:$0xf]
    %v49 = vld [vmem:[%s1 + $0x30] sm:$0xf]
    %v50 = vld [vmem:[%s1 + $0x34] sm:$0xf]
    %v51 = vld [vmem:[%s1 + $0x38] sm:$0xf]
    %v52 = vld [vmem:[%s1 + $0x3c] sm:$0xf]
    %v53 = vld [vmem:[%s2] sm:$0x1]
    %v54 = vpack.c.bf16 %v36, %v36
    %v56 = vlaneseq
    %v57 = vshrl.u32 %v56, 7
    %v58 = vsub.s32 0, %v57
    %v59 = vrot.slane %v53, %v58
    %v77 = vunpack.c.l.b16 %v37
    %v78 = vunpack.c.l.b16 %v38
    %v79 = vunpack.c.l.b16 %v39
    %v80 = vunpack.c.l.b16 %v40
    %v81 = vunpack.c.l.b16 %v41
    %v82 = vunpack.c.l.b16 %v42
    %v83 = vunpack.c.l.b16 %v43
    %v84 = vunpack.c.l.b16 %v44
    %v85 = vunpack.c.l.b16 %v45
    %v86 = vunpack.c.l.b16 %v46
    %v87 = vunpack.c.l.b16 %v47
    %v88 = vunpack.c.l.b16 %v48
    %v89 = vunpack.c.l.b16 %v49
    %v90 = vunpack.c.l.b16 %v50
    %v91 = vunpack.c.l.b16 %v51
    %v92 = vunpack.c.l.b16 %v52
    %v93 = vpack.c.b16 %v78, %v77
    %v94 = vpack.c.b16 %v80, %v79
    %v95 = vpack.c.b16 %v82, %v81
    %v96 = vpack.c.b16 %v84, %v83
    %v97 = vpack.c.b16 %v86, %v85
    %v98 = vpack.c.b16 %v88, %v87
    %v99 = vpack.c.b16 %v90, %v89
    %v100 = vpack.c.b16 %v92, %v91
    %109 = vmatprep.subr.bf16.mxu0 0
    %110 = vmatpush1.bf16.msra.mxu0 %v93
    %111 = vmatprep.subr.bf16.mxu0 0
    %112 = vmatpush1.bf16.msra.mxu0 %v94
    %113 = vmatprep.subr.bf16.mxu0 0
    %114 = vmatpush1.bf16.msra.mxu0 %v95
    %115 = vmatprep.subr.bf16.mxu0 0
    %116 = vmatpush1.bf16.msra.mxu0 %v96
    %117 = vmatprep.subr.bf16.mxu0 0
    %118 = vmatpush1.bf16.msra.mxu0 %v97
    %119 = vmatprep.subr.bf16.mxu0 0
    %120 = vmatpush1.bf16.msra.mxu0 %v98
    %121 = vmatprep.subr.bf16.mxu0 0
    %122 = vmatpush1.bf16.msra.mxu0 %v99
    %123 = vmatprep.subr.bf16.mxu0 0
    %124 = vmatpush1.bf16.msra.mxu0 %v100
    %125 = vmatprep.subr.bf16.mxu0 0
    %126 = vmatpush1.bf16.msra.mxu0 0
    %127 = vmatprep.subr.bf16.mxu0 0
    %128 = vmatpush1.bf16.msra.mxu0 0
    %129 = vmatprep.subr.bf16.mxu0 0
    %130 = vmatpush1.bf16.msra.mxu0 0
    %131 = vmatprep.subr.bf16.mxu0 0
    %132 = vmatpush1.bf16.msra.mxu0 0
    %133 = vmatprep.subr.bf16.mxu0 0
    %134 = vmatpush1.bf16.msra.mxu0 0
    %135 = vmatprep.subr.bf16.mxu0 0
    %136 = vmatpush1.bf16.msra.mxu0 0
    %137 = vmatprep.subr.bf16.mxu0 0
    %138 = vmatpush1.bf16.msra.mxu0 0
    %139 = vmatprep.subr.bf16.mxu0 0
    %140 = vmatpush1.bf16.msra.mxu0 0
    %141 = vmatprep.mubr.bf16.mxu0 0
    %142 = vmatmul.mubr.bf16.gmra.mrb[0].mxu0 %v54
    %v143 = vpop.f32.mrb[0].mxu0
    %v144 = vadd.f32 %v59, %v143
    %v145 = vpop.f32.mrb[0].mxu0
    %v146 = vpop.f32.mrb[0].mxu0
    %v147 = vpop.f32.mrb[0].mxu0
    %148 = vdwg.mxu0
    %v149 = vmax.f32 %v144, 0.0
    %v150 = vld [vmem:[%s3] sm:$0xf]
    %v151 = vld [vmem:[%s3 + $0x4] sm:$0xf]
    %v152 = vld [vmem:[%s3 + $0x8] sm:$0xf]
    %v153 = vld [vmem:[%s3 + $0xc] sm:$0xf]
    %v154 = vld [vmem:[%s3 + $0x10] sm:$0xf]
    %v155 = vld [vmem:[%s3 + $0x14] sm:$0xf]
    %v156 = vld [vmem:[%s3 + $0x18] sm:$0xf]
    %v157 = vld [vmem:[%s3 + $0x1c] sm:$0xf]
    %v158 = vld [vmem:[%s3 + $0x20] sm:$0xf]
    %v159 = vld [vmem:[%s3 + $0x24] sm:$0xf]
    %v160 = vld [vmem:[%s3 + $0x28] sm:$0xf]
    %v161 = vld [vmem:[%s3 + $0x2c] sm:$0xf]
    %v162 = vld [vmem:[%s3 + $0x30] sm:$0xf]
    %v163 = vld [vmem:[%s3 + $0x34] sm:$0xf]
    %v164 = vld [vmem:[%s3 + $0x38] sm:$0xf]
    %v165 = vld [vmem:[%s3 + $0x3c] sm:$0xf]
    %v166 = vld [vmem:[%s4] sm:$0x1]
    %v167 = vpack.c.bf16 %v149, %v149
    %v169 = vlaneseq
    %v170 = vshrl.u32 %v169, 7
    %v171 = vsub.s32 0, %v170
    %v172 = vrot.slane %v166, %v171
    %v190 = vunpack.c.l.b16 %v150
    %v191 = vunpack.c.l.b16 %v151
    %v192 = vunpack.c.l.b16 %v152
    %v193 = vunpack.c.l.b16 %v153
    %v194 = vunpack.c.l.b16 %v154
    %v195 = vunpack.c.l.b16 %v155
    %v196 = vunpack.c.l.b16 %v156
    %v197 = vunpack.c.l.b16 %v157
    %v198 = vunpack.c.l.b16 %v158
    %v199 = vunpack.c.l.b16 %v159
    %v200 = vunpack.c.l.b16 %v160
    %v201 = vunpack.c.l.b16 %v161
    %v202 = vunpack.c.l.b16 %v162
    %v203 = vunpack.c.l.b16 %v163
    %v204 = vunpack.c.l.b16 %v164
    %v205 = vunpack.c.l.b16 %v165
    %v206 = vpack.c.b16 %v191, %v190
    %v207 = vpack.c.b16 %v193, %v192
    %v208 = vpack.c.b16 %v195, %v194
    %v209 = vpack.c.b16 %v197, %v196
    %v210 = vpack.c.b16 %v199, %v198
    %v211 = vpack.c.b16 %v201, %v200
    %v212 = vpack.c.b16 %v203, %v202
    %v213 = vpack.c.b16 %v205, %v204
    %222 = vmatprep.subr.bf16.mxu0 0
    %223 = vmatpush1.bf16.msra.mxu0 %v206
    %224 = vmatprep.subr.bf16.mxu0 0
    %225 = vmatpush1.bf16.msra.mxu0 %v207
    %226 = vmatprep.subr.bf16.mxu0 0
    %227 = vmatpush1.bf16.msra.mxu0 %v208
    %228 = vmatprep.subr.bf16.mxu0 0
    %229 = vmatpush1.bf16.msra.mxu0 %v209
    %230 = vmatprep.subr.bf16.mxu0 0
    %231 = vmatpush1.bf16.msra.mxu0 %v210
    %232 = vmatprep.subr.bf16.mxu0 0
    %233 = vmatpush1.bf16.msra.mxu0 %v211
    %234 = vmatprep.subr.bf16.mxu0 0
    %235 = vmatpush1.bf16.msra.mxu0 %v212
    %236 = vmatprep.subr.bf16.mxu0 0
    %237 = vmatpush1.bf16.msra.mxu0 %v213
    %238 = vmatprep.subr.bf16.mxu0 0
    %239 = vmatpush1.bf16.msra.mxu0 0
    %240 = vmatprep.subr.bf16.mxu0 0
    %241 = vmatpush1.bf16.msra.mxu0 0
    %242 = vmatprep.subr.bf16.mxu0 0
    %243 = vmatpush1.bf16.msra.mxu0 0
    %244 = vmatprep.subr.bf16.mxu0 0
    %245 = vmatpush1.bf16.msra.mxu0 0
    %246 = vmatprep.subr.bf16.mxu0 0
    %247 = vmatpush1.bf16.msra.mxu0 0
    %248 = vmatprep.subr.bf16.mxu0 0
    %249 = vmatpush1.bf16.msra.mxu0 0
    %250 = vmatprep.subr.bf16.mxu0 0
    %251 = vmatpush1.bf16.msra.mxu0 0
    %252 = vmatprep.subr.bf16.mxu0 0
    %253 = vmatpush1.bf16.msra.mxu0 0
    %254 = vmatprep.mubr.bf16.mxu0 0
    %255 = vmatmul.mubr.bf16.gmra.mrb[0].mxu0 %v167
    %v256 = vpop.f32.mrb[0].mxu0
    %v257 = vadd.f32 %v172, %v256
    %v258 = vpop.f32.mrb[0].mxu0
    %v259 = vpop.f32.mrb[0].mxu0
    %v260 = vpop.f32.mrb[0].mxu0
    %261 = vdwg.mxu0
    %v262 = vmax.f32 %v257, 0.0
    %v263 = vld [vmem:[%s5] sm:$0xf]
    %v264 = vld [vmem:[%s5 + $0x4] sm:$0xf]
    %v265 = vld [vmem:[%s5 + $0x8] sm:$0xf]
    %v266 = vld [vmem:[%s5 + $0xc] sm:$0xf]
    %v267 = vld [vmem:[%s5 + $0x10] sm:$0xf]
    %v268 = vld [vmem:[%s5 + $0x14] sm:$0xf]
    %v269 = vld [vmem:[%s5 + $0x18] sm:$0xf]
    %v270 = vld [vmem:[%s5 + $0x1c] sm:$0xf]
    %v271 = vld [vmem:[%s5 + $0x20] sm:$0xf]
    %v272 = vld [vmem:[%s5 + $0x24] sm:$0xf]
    %v273 = vld [vmem:[%s5 + $0x28] sm:$0xf]
    %v274 = vld [vmem:[%s5 + $0x2c] sm:$0xf]
    %v275 = vld [vmem:[%s5 + $0x30] sm:$0xf]
    %v276 = vld [vmem:[%s5 + $0x34] sm:$0xf]
    %v277 = vld [vmem:[%s5 + $0x38] sm:$0xf]
    %v278 = vld [vmem:[%s5 + $0x3c] sm:$0xf]
    %v279 = vld [vmem:[%s6] sm:$0x1]
    %v280 = vpack.c.bf16 %v262, %v262
    %v282 = vlaneseq
    %v283 = vshrl.u32 %v282, 7
    %v284 = vsub.s32 0, %v283
    %v285 = vrot.slane %v279, %v284
    %v303 = vunpack.c.l.b16 %v263
    %v304 = vunpack.c.l.b16 %v264
    %v305 = vunpack.c.l.b16 %v265
    %v306 = vunpack.c.l.b16 %v266
    %v307 = vunpack.c.l.b16 %v267
    %v308 = vunpack.c.l.b16 %v268
    %v309 = vunpack.c.l.b16 %v269
    %v310 = vunpack.c.l.b16 %v270
    %v311 = vunpack.c.l.b16 %v271
    %v312 = vunpack.c.l.b16 %v272
    %v313 = vunpack.c.l.b16 %v273
    %v314 = vunpack.c.l.b16 %v274
    %v315 = vunpack.c.l.b16 %v275
    %v316 = vunpack.c.l.b16 %v276
    %v317 = vunpack.c.l.b16 %v277
    %v318 = vunpack.c.l.b16 %v278
    %v319 = vpack.c.b16 %v304, %v303
    %v320 = vpack.c.b16 %v306, %v305
    %v321 = vpack.c.b16 %v308, %v307
    %v322 = vpack.c.b16 %v310, %v309
    %v323 = vpack.c.b16 %v312, %v311
    %v324 = vpack.c.b16 %v314, %v313
    %v325 = vpack.c.b16 %v316, %v315
    %v326 = vpack.c.b16 %v318, %v317
    %335 = vmatprep.subr.bf16.mxu0 0
    %336 = vmatpush1.bf16.msra.mxu0 %v319
    %337 = vmatprep.subr.bf16.mxu0 0
    %338 = vmatpush1.bf16.msra.mxu0 %v320
    %339 = vmatprep.subr.bf16.mxu0 0
    %340 = vmatpush1.bf16.msra.mxu0 %v321
    %341 = vmatprep.subr.bf16.mxu0 0
    %342 = vmatpush1.bf16.msra.mxu0 %v322
    %343 = vmatprep.subr.bf16.mxu0 0
    %344 = vmatpush1.bf16.msra.mxu0 %v323
    %345 = vmatprep.subr.bf16.mxu0 0
    %346 = vmatpush1.bf16.msra.mxu0 %v324
    %347 = vmatprep.subr.bf16.mxu0 0
    %348 = vmatpush1.bf16.msra.mxu0 %v325
    %349 = vmatprep.subr.bf16.mxu0 0
    %350 = vmatpush1.bf16.msra.mxu0 %v326
    %351 = vmatprep.subr.bf16.mxu0 0
    %352 = vmatpush1.bf16.msra.mxu0 0
    %353 = vmatprep.subr.bf16.mxu0 0
    %354 = vmatpush1.bf16.msra.mxu0 0
    %355 = vmatprep.subr.bf16.mxu0 0
    %356 = vmatpush1.bf16.msra.mxu0 0
    %357 = vmatprep.subr.bf16.mxu0 0
    %358 = vmatpush1.bf16.msra.mxu0 0
    %359 = vmatprep.subr.bf16.mxu0 0
    %360 = vmatpush1.bf16.msra.mxu0 0
    %361 = vmatprep.subr.bf16.mxu0 0
    %362 = vmatpush1.bf16.msra.mxu0 0
    %363 = vmatprep.subr.bf16.mxu0 0
    %364 = vmatpush1.bf16.msra.mxu0 0
    %365 = vmatprep.subr.bf16.mxu0 0
    %366 = vmatpush1.bf16.msra.mxu0 0
    %367 = vmatprep.mubr.bf16.mxu0 0
    %368 = vmatmul.mubr.bf16.gmra.mrb[0].mxu0 %v280
    %v369 = vpop.f32.mrb[0].mxu0
    %v370 = vadd.f32 %v285, %v369
    %v371 = vpop.f32.mrb[0].mxu0
    %v372 = vpop.f32.mrb[0].mxu0
    %v373 = vpop.f32.mrb[0].mxu0
    %374 = vdwg.mxu0
    %375 = vst [vmem:[%s9] sm:$0xff] %v370
    %v376 = vlaneseq
    %v377 = vand.u32 %v376, 127
    %vm378 = vcmp.lt.s32.totalorder %v377, 4
    %v379 = vsel %vm378, %v370, -1e+30
    %380 = vmax.xlane.f32.xlu0 %v379
    %v381 = vpop.xlane.xlu0 %380
    %v382 = vsub.f32 %v379, %v381
    %v383 = vmul.f32 %v382, 1.442695
    %v384 = vpow.pop %v383
    %385 = vadd.xlane.f32.xlu0 %v384
    %v386 = vpop.xlane.xlu0 %385
    %v387 = vlog2.pop %v386
    %v388 = vmul.f32 %v387, 0.6931472
    %v389 = vadd.f32 %v388, %v381
    %v390 = vld [vmem:[%s7] sm:$0xff]
    %391 = vset.pattern.permute.xlu0 0
    %392 = vperm.xlu0 %391, %v390
    %v393 = vpop.permute.xlu0 %392
    %vm394 = vcmp.eq.s32.totalorder %v377, %v393
    %v395 = vsel %vm394, 1, 0
    %v396 = vcvt.s32.f32 %v395
    %v397 = vmul.f32 %v396, %v379
    %398 = vadd.xlane.f32.xlu0 %v397
    %v399 = vpop.xlane.xlu0 %398
    %v400 = vsub.f32 %v389, %v399
    %p401 = scmp.eq.s32.totalorder 0, 0
    // Predicated region
    $region38: #{adv_mlp_forward.1} parent=1 // pred_check
      %p402 = pneg %p401
    $region39: #{adv_mlp_forward.1} parent=1 // pred_check_branch
      %404 = sbr.rel (%p402) target = $region41
    $region40: #{adv_mlp_forward.1} parent=1 // pred_region
      %vm405 = vcmask 0
      %406 = vst.msk [vmem:[#allocation2] sm:$0x1] %vm405, 0.0
    $region41: #{adv_mlp_forward.1} parent=1 // pred_fallthru
      _
    %v407 = vld [vmem:[#allocation2] sm:$0x1]
    %v408 = vld [vmem:[%s8] sm:$0xff]
    %v409 = vmul.f32 %v400, %v408
    %vm410 = vcmask 7168
    %v411 = vsel %vm410, %v409, 0.0
    %v412 = vrot.slane %v411, 4
    %v413 = vadd.f32 %v411, %v412
    %v414 = vrot.slane %v413, 2
    %v415 = vadd.f32 %v413, %v414
    %v416 = vrot.slane %v415, 1
    %v417 = vadd.f32 %v415, %v416
    %v418 = vadd.f32 %v407, %v417
    %vm419 = vcmask 0
    %420 = vst.msk [vmem:[#allocation2] sm:$0x1] %vm419, %v418
    // Predicated region
    $region42: #{adv_mlp_forward.1} parent=1 // pred_check
      _
    $region43: #{adv_mlp_forward.1} parent=1 // pred_check_branch
      %422 = sbr.rel (0) target = $region45
    $region44: #{adv_mlp_forward.1} parent=1 // pred_region
      _
    $region45: #{adv_mlp_forward.1} parent=1 // pred_fallthru
      _
    // Predicated region
    $region46: #{adv_mlp_forward.1} parent=1 // pred_check
      _
    $region47: #{adv_mlp_forward.1} parent=1 // pred_check_branch
      %424 = sbr.rel (0) target = $region49
    $region48: #{adv_mlp_forward.1} parent=1 // pred_region
      %s426 = ssub.s32 16, 16
      %427 = vsyncadd [#allocation3], %s426
      %s429 = sshll.u32 [#allocation2], 4
      %s430 = int_to_ptr.vmem [resolvable:$true] %s429
      %432 = dma.vmem_to_hbm [thread:$0]  %s430, 16, %s10, [#allocation3]
    $region49: #{adv_mlp_forward.1} parent=1 // pred_fallthru
      _
    // Predicated region
    $region50: #{adv_mlp_forward.1} parent=1 // pred_check
      _
    $region51: #{adv_mlp_forward.1} parent=1 // pred_check_branch
      %434 = sbr.rel (0) target = $region53
    $region52: #{adv_mlp_forward.1} parent=1 // pred_region
      _
    $region53: #{adv_mlp_forward.1} parent=1 // pred_fallthru
      _
    // Predicated region
    $region54: #{adv_mlp_forward.1} parent=1 // pred_check
      _
    $region55: #{adv_mlp_forward.1} parent=1 // pred_check_branch
      %436 = sbr.rel (0) target = $region57
    $region56: #{adv_mlp_forward.1} parent=1 // pred_region
      %437 = dma.done [#allocation3], 16
    $region57: #{adv_mlp_forward.1} parent=1 // pred_fallthru
      _
    %438 = vsyncpa [#allocation3], 1

</llo_original>
